<compile_context>
chip_gen: v7x
topology: tpu7x:2x2x1
jax: 0.10.0
libtpu: 0.0.40
codegen_flags: <defaults>
</compile_context>

<pallas_src>
import jax
import jax.numpy as jnp
from jax.experimental import pallas as pl
from jax.experimental.pallas import tpu as pltpu


def mlp_kernel(params_ref, x_ref, o_ref):
    """params_ref: SMEM f32[7] = [w1_00, w1_10, b1_0, b1_1, w2_00, w2_01, b2_0].
    x_ref / o_ref: VMEM f32[block_rows, LANE] tiles of the batch slab."""
    # Scalar parameter reads from SMEM (cheap scalar path, no vector DMA).
    w1_0 = params_ref[0]   # linear1.weight[0, 0]
    w1_1 = params_ref[1]   # linear1.weight[1, 0]
    b1_0 = params_ref[2]   # linear1.bias[0]
    b1_1 = params_ref[3]   # linear1.bias[1]
    w2_0 = params_ref[4]   # linear2.weight[0, 0]
    w2_1 = params_ref[5]   # linear2.weight[0, 1]
    b2_0 = params_ref[6]   # linear2.bias[0]

    x = x_ref[...]                                   # (block_rows, LANE) f32

    def sig(z):
        # sigmoid(z) == 0.5 * tanh(0.5 * z) + 0.5  -> single EUP op per call
        # instead of exp + divide (VALU-heavy, worst on v5e).
        return 0.5 * jnp.tanh(0.5 * z) + 0.5

    # linear1 + sigmoid: D_in == 1 => scalar-broadcast FMA per hidden unit.
    a1_0 = sig(x * w1_0 + b1_0)                      # hidden unit 0
    a1_1 = sig(x * w1_1 + b1_1)                      # hidden unit 1

    # linear2 + sigmoid: explicit 2-term reduction (f32 throughout).
    o_ref[...] = sig(a1_0 * w2_0 + a1_1 * w2_1 + b2_0)


def net_forward(x, w1, b1, w2, b2):
    """Forward pass matching the PyTorch Net.

    x:  (N, 1)  f32
    w1: (2, 1)  f32  (linear1.weight, PyTorch layout)
    b1: (2,)    f32  (linear1.bias)
    w2: (1, 2)  f32  (linear2.weight, PyTorch layout)
    b2: (1,)    f32  (linear2.bias)
    returns (N, 1) f32
    """
    n, d_in = x.shape
    assert d_in == 1 and w1.shape == (2, 1) and w2.shape == (1, 2)

    # Pack all parameters into one tiny f32 vector for SMEM.
    params = jnp.concatenate(
        [w1.reshape(-1), b1.reshape(-1), w2.reshape(-1), b2.reshape(-1)]
    ).astype(jnp.float32)                            # (7,)

    # ---- Layout plumbing: flat batch -> (rows, LANE) slab, fully (8,128)
    # aligned so every tile is a dense, unmasked vreg block. Valid because
    # D_in == 1 (contiguous relabel, not a transpose).
    LANE = 512 if n >= 8 * 512 else 128              # lane width (mult of 128)
    MAX_BLOCK_ROWS = 512                             # (512,512) f32 = 1 MiB/buffer
    rows = pl.cdiv(n, LANE)
    rows = -(-rows // 8) * 8                         # sublane granularity
    block_rows = min(rows, MAX_BLOCK_ROWS)
    rows = -(-rows // block_rows) * block_rows       # every grid tile is full
    n_pad = rows * LANE

    x_flat = x.astype(jnp.float32).reshape(-1)       # (N,)
    x_slab = jnp.pad(x_flat, (0, n_pad - n)).reshape(rows, LANE)

    grid = (rows // block_rows,)

    y_slab = pl.pallas_call(
        mlp_kernel,
        out_shape=jax.ShapeDtypeStruct((rows, LANE), jnp.float32),
        grid=grid,
        in_specs=[
            # params: whole f32[7] array in scalar memory, shared by all tiles.
            pl.BlockSpec(memory_space=pltpu.MemorySpace.SMEM),
            # x slab: tiled along the row axis, auto double-buffered.
            pl.BlockSpec((block_rows, LANE), lambda i: (i, 0)),
        ],
        out_specs=pl.BlockSpec((block_rows, LANE), lambda i: (i, 0)),
        compiler_params=pltpu.CompilerParams(
            dimension_semantics=("parallel",),       # v7x: shard across 2 TCs
        ),
        cost_estimate=pl.CostEstimate(
            flops=10 * n_pad,
            transcendentals=3 * n_pad,
            bytes_accessed=8 * n_pad,                # 4 B in + 4 B out / elem
        ),
        # Reuse the padded input slab's HBM buffer for the output.
        input_output_aliases={1: 0},
    )(params, x_slab)

    return y_slab.reshape(-1)[:n].reshape(n, 1)      # strip padding -> (N, 1)


if __name__ == "__main__":
    D_in, H, D_out = 1, 2, 1
    N = 2000  # small demo batch; deliberately not a multiple of 128 to
              # exercise the padding / full-tile path.

    # Deterministic parameter init (synthetic; mimics nn.Linear shapes).
    key = jax.random.PRNGKey(0)
    k_x, k_w1, k_b1, k_w2, k_b2 = jax.random.split(key, 5)
    w1 = jax.random.normal(k_w1, (H, D_in), jnp.float32) * 0.5   # linear1.weight
    b1 = jax.random.normal(k_b1, (H,), jnp.float32) * 0.5        # linear1.bias
    w2 = jax.random.normal(k_w2, (D_out, H), jnp.float32) * 0.5  # linear2.weight
    b2 = jax.random.normal(k_b2, (D_out,), jnp.float32) * 0.5    # linear2.bias

    x = jax.random.normal(k_x, (N, D_in), jnp.float32)

    fwd = jax.jit(net_forward)
    yhat = jax.block_until_ready(fwd(x, w1, b1, w2, b2))

    # Pure-JAX reference of the PyTorch forward semantics.
    l1 = x @ w1.T + b1
    a1 = jax.nn.sigmoid(l1)
    l2 = a1 @ w2.T + b2
    ref = jax.nn.sigmoid(l2)

    assert yhat.shape == (N, D_out)
    # tanh-form sigmoid is mathematically identical; allow ULP-level slack.
    assert jnp.allclose(yhat, ref, atol=1e-5, rtol=1e-5)

    print("KERNEL_OK")
</pallas_src>

<mosaic_0001>
module attributes {stable_mosaic.version = 11 : i64} {
  func.func @mlp_kernel(%arg0: i32, %arg1: memref<7xf32, #tpu.memory_space<smem>>, %arg2: memref<16x128xf32, #tpu.memory_space<vmem>>, %arg3: memref<16x128xf32, #tpu.memory_space<vmem>>) attributes {dimension_semantics = [#tpu.dimension_semantics<parallel>], iteration_bounds = array<i64: 1>, scalar_prefetch = 0 : i64, scratch_operands = 0 : i64, tpu.core_type = #tpu.core_type<tc>, window_params = [{transform_indices = @transform_0, window_bounds = array<i64: 7>}, {transform_indices = @transform_1, window_bounds = array<i64: 16, 128>}, {transform_indices = @transform_2, window_bounds = array<i64: 16, 128>}]} {
    %c0 = arith.constant 0 : index
    %0 = memref.load %arg1[%c0] : memref<7xf32, #tpu.memory_space<smem>>
    %c1 = arith.constant 1 : index
    %1 = memref.load %arg1[%c1] : memref<7xf32, #tpu.memory_space<smem>>
    %c2 = arith.constant 2 : index
    %2 = memref.load %arg1[%c2] : memref<7xf32, #tpu.memory_space<smem>>
    %c3 = arith.constant 3 : index
    %3 = memref.load %arg1[%c3] : memref<7xf32, #tpu.memory_space<smem>>
    %c4 = arith.constant 4 : index
    %4 = memref.load %arg1[%c4] : memref<7xf32, #tpu.memory_space<smem>>
    %c5 = arith.constant 5 : index
    %5 = memref.load %arg1[%c5] : memref<7xf32, #tpu.memory_space<smem>>
    %c6 = arith.constant 6 : index
    %6 = memref.load %arg1[%c6] : memref<7xf32, #tpu.memory_space<smem>>
    %c0_0 = arith.constant 0 : index
    %c0_1 = arith.constant 0 : index
    %7 = vector.load %arg2[%c0_0, %c0_1] : memref<16x128xf32, #tpu.memory_space<vmem>>, vector<16x128xf32>
    %8 = vector.broadcast %0 : f32 to vector<16x128xf32>
    %9 = arith.mulf %7, %8 : vector<16x128xf32>
    %10 = vector.broadcast %2 : f32 to vector<16x128xf32>
    %11 = arith.addf %9, %10 : vector<16x128xf32>
    %cst = arith.constant 5.000000e-01 : f32
    %12 = vector.broadcast %cst : f32 to vector<16x128xf32>
    %13 = arith.mulf %12, %11 : vector<16x128xf32>
    %14 = math.tanh %13 : vector<16x128xf32>
    %cst_2 = arith.constant 5.000000e-01 : f32
    %15 = vector.broadcast %cst_2 : f32 to vector<16x128xf32>
    %16 = arith.mulf %15, %14 : vector<16x128xf32>
    %cst_3 = arith.constant 5.000000e-01 : f32
    %17 = vector.broadcast %cst_3 : f32 to vector<16x128xf32>
    %18 = arith.addf %16, %17 : vector<16x128xf32>
    %19 = vector.broadcast %1 : f32 to vector<16x128xf32>
    %20 = arith.mulf %7, %19 : vector<16x128xf32>
    %21 = vector.broadcast %3 : f32 to vector<16x128xf32>
    %22 = arith.addf %20, %21 : vector<16x128xf32>
    %cst_4 = arith.constant 5.000000e-01 : f32
    %23 = vector.broadcast %cst_4 : f32 to vector<16x128xf32>
    %24 = arith.mulf %23, %22 : vector<16x128xf32>
    %25 = math.tanh %24 : vector<16x128xf32>
    %cst_5 = arith.constant 5.000000e-01 : f32
    %26 = vector.broadcast %cst_5 : f32 to vector<16x128xf32>
    %27 = arith.mulf %26, %25 : vector<16x128xf32>
    %cst_6 = arith.constant 5.000000e-01 : f32
    %28 = vector.broadcast %cst_6 : f32 to vector<16x128xf32>
    %29 = arith.addf %27, %28 : vector<16x128xf32>
    %30 = vector.broadcast %4 : f32 to vector<16x128xf32>
    %31 = arith.mulf %18, %30 : vector<16x128xf32>
    %32 = vector.broadcast %5 : f32 to vector<16x128xf32>
    %33 = arith.mulf %29, %32 : vector<16x128xf32>
    %34 = arith.addf %31, %33 : vector<16x128xf32>
    %35 = vector.broadcast %6 : f32 to vector<16x128xf32>
    %36 = arith.addf %34, %35 : vector<16x128xf32>
    %cst_7 = arith.constant 5.000000e-01 : f32
    %37 = vector.broadcast %cst_7 : f32 to vector<16x128xf32>
    %38 = arith.mulf %37, %36 : vector<16x128xf32>
    %39 = math.tanh %38 : vector<16x128xf32>
    %cst_8 = arith.constant 5.000000e-01 : f32
    %40 = vector.broadcast %cst_8 : f32 to vector<16x128xf32>
    %41 = arith.mulf %40, %39 : vector<16x128xf32>
    %cst_9 = arith.constant 5.000000e-01 : f32
    %42 = vector.broadcast %cst_9 : f32 to vector<16x128xf32>
    %43 = arith.addf %41, %42 : vector<16x128xf32>
    %c0_10 = arith.constant 0 : index
    %c0_11 = arith.constant 0 : index
    %44 = vector.load %arg3[%c0_10, %c0_11] : memref<16x128xf32, #tpu.memory_space<vmem>>, vector<16x128xf32>
    tpu.vector_store %arg3[%c0_10, %c0_11], %43 {strides = array<i32>} : memref<16x128xf32, #tpu.memory_space<vmem>>, vector<16x128xf32>,
    return
  }
  func.func @transform_0(%arg0: i32) -> i32 {
    %c0_i32 = arith.constant 0 : i32
    %c0_i32_0 = arith.constant 0 : i32
    return %c0_i32 : i32
  }
  func.func @transform_1(%arg0: i32) -> (i32, i32) {
    %c0_i32 = arith.constant 0 : i32
    %c0_i32_0 = arith.constant 0 : i32
    return %arg0, %c0_i32 : i32, i32
  }
  func.func @transform_2(%arg0: i32) -> (i32, i32) {
    %c0_i32 = arith.constant 0 : i32
    %c0_i32_0 = arith.constant 0 : i32
    return %arg0, %c0_i32 : i32, i32
  }
}

</mosaic_0001>

<llo_original>
// kernel: net_forward.1
$region0: #{net_forward.1}
  #allocation0 [shape = 'u32[]', space=smem, size = 0x4, offset = 0x4, fixed_abs, tag = 'smem constant byte address 0x4 - core index']
  #allocation1 [shape = 'u32[144,128]{1,0:T(1,128)}', space=vmem, size = 0x12000, scoped, tag = 'internal scratch']
  %s0 = inlined_call_operand.vmem [shape: f32[7], index: 0, kind: input, shape index: {}]
  %s1 = inlined_call_operand.vmem [shape: f32[16,128], index: 1, kind: input, shape index: {}, may-alias: {1,2}]
  %s2 = inlined_call_operand.vmem [shape: f32[16,128], index: 2, kind: output, shape index: {}, may-alias: {1,2}]
  %s3 = sld [smem:[#allocation0]]
  $region22: #{net_forward.1} parent=0
    _
  %s5 = ssub.s32 1, %s3
  %s6 = scalar_select 0, %s5, %s3
  $region1: #{net_forward.1} parent=0
    #allocation2 [shape = 'u8[512]{0}', space=smem, size = 0x200, scoped, tag = 'input window, operand 0, single buffered']
    #allocation3 [shape = 's32[1]{0}', space=sflag, size = 0x4, scoped, tag = 'scoped memory for net_forward.1']
    %7 = vsyncpa [#allocation3], 0
    // Predicated region
    $region2: #{net_forward.1} parent=1 // pred_check
      _
    $region3: #{net_forward.1} parent=1 // pred_check_branch
      %9 = sbr.rel (0) target = $region5
    $region4: #{net_forward.1} parent=1 // pred_region
      %s11 = ssub.s32 16, 16
      %12 = vsyncadd [#allocation3], %s11
      %s14 = sshll.u32 %s0, 4
      %s15 = int_to_ptr.vmem [resolvable:$true] %s14
      %17 = dma.vmem_to_smem %s15, 16, [#allocation2], [#allocation3]
    $region5: #{net_forward.1} parent=1 // pred_fallthru
      _
    // Predicated region
    $region6: #{net_forward.1} parent=1 // pred_check
      _
    $region7: #{net_forward.1} parent=1 // pred_check_branch
      %19 = sbr.rel (0) target = $region9
    $region8: #{net_forward.1} parent=1 // pred_region
      _
    $region9: #{net_forward.1} parent=1 // pred_fallthru
      _
    // Predicated region
    $region10: #{net_forward.1} parent=1 // pred_check
      _
    $region11: #{net_forward.1} parent=1 // pred_check_branch
      %21 = sbr.rel (0) target = $region13
    $region12: #{net_forward.1} parent=1 // pred_region
      %22 = dma.done [#allocation3], 16
    $region13: #{net_forward.1} parent=1 // pred_fallthru
      _
    %23 = sfence
    %s24 = sld [smem:[#allocation2]]
    %s25 = sld [smem:[#allocation2 + $0x1]]
    %s26 = sld [smem:[#allocation2 + $0x2]]
    %s27 = sld [smem:[#allocation2 + $0x3]]
    %s28 = sld [smem:[#allocation2 + $0x4]]
    %s29 = sld [smem:[#allocation2 + $0x5]]
    %s30 = sld [smem:[#allocation2 + $0x6]]
    %v31 = vld [vmem:[%s1] sm:$0xff]
    %v32 = vld [vmem:[%s1 + $0x8] sm:$0xff]
    %v33 = vstv %s24
    %v34 = vmul.f32 %v31, %v33
    %v35 = vmul.f32 %v32, %v33
    %v36 = vstv %s26
    %v37 = vadd.f32 %v34, %v36
    %v38 = vadd.f32 %v35, %v36
    %v39 = vmul.f32 %v37, 0.5
    %v40 = vmul.f32 %v38, 0.5
    %v41 = vtanh.pop %v39
    %v42 = vtanh.pop %v40
    %v43 = vmul.f32 %v41, 0.5
    %v44 = vmul.f32 %v42, 0.5
    %v45 = vadd.f32 %v43, 0.5
    %v46 = vadd.f32 %v44, 0.5
    %v47 = vstv %s25
    %v48 = vmul.f32 %v31, %v47
    %v49 = vmul.f32 %v32, %v47
    %v50 = vstv %s27
    %v51 = vadd.f32 %v48, %v50
    %v52 = vadd.f32 %v49, %v50
    %v53 = vmul.f32 %v51, 0.5
    %v54 = vmul.f32 %v52, 0.5
    %v55 = vtanh.pop %v53
    %v56 = vtanh.pop %v54
    %v57 = vmul.f32 %v55, 0.5
    %v58 = vmul.f32 %v56, 0.5
    %v59 = vadd.f32 %v57, 0.5
    %v60 = vadd.f32 %v58, 0.5
    %v61 = vstv %s28
    %v62 = vmul.f32 %v45, %v61
    %v63 = vmul.f32 %v46, %v61
    %v64 = vstv %s29
    %v65 = vmul.f32 %v59, %v64
    %v66 = vmul.f32 %v60, %v64
    %v67 = vadd.f32 %v62, %v65
    %v68 = vadd.f32 %v63, %v66
    %v69 = vstv %s30
    %v70 = vadd.f32 %v67, %v69
    %v71 = vadd.f32 %v68, %v69
    %v72 = vmul.f32 %v70, 0.5
    %v73 = vmul.f32 %v71, 0.5
    %v74 = vtanh.pop %v72
    %v75 = vtanh.pop %v73
    %v76 = vmul.f32 %v74, 0.5
    %v77 = vmul.f32 %v75, 0.5
    %v78 = vadd.f32 %v76, 0.5
    %v79 = vadd.f32 %v77, 0.5
    %80 = vst [vmem:[%s2] sm:$0xff] %v78
    %81 = vst [vmem:[%s2 + $0x8] sm:$0xff] %v79
    // Predicated region
    $region14: #{net_forward.1} parent=1 // pred_check
      _
    $region15: #{net_forward.1} parent=1 // pred_check_branch
      %83 = sbr.rel (0) target = $region17
    $region16: #{net_forward.1} parent=1 // pred_region
      _
    $region17: #{net_forward.1} parent=1 // pred_fallthru
      _
    // Predicated region
    $region18: #{net_forward.1} parent=1 // pred_check
      _
    $region19: #{net_forward.1} parent=1 // pred_check_branch
      %85 = sbr.rel (0) target = $region21
    $region20: #{net_forward.1} parent=1 // pred_region
      _
    $region21: #{net_forward.1} parent=1 // pred_fallthru
      _
    %86 = vsyncpa [#allocation3], 1

</llo_original>
